<compile_context>
chip_gen: v7x
topology: tpu7x:2x2x1
jax: 0.10.0
libtpu: 0.0.40
codegen_flags: <defaults>
</compile_context>

<pallas_src>
import jax
import jax.numpy as jnp
from jax.experimental import pallas as pl
from jax.experimental.pallas import tpu as pltpu


_MAX_BATCH_TILE = 1024    # rows per grid step for very large batches
_SINGLE_BLOCK_MAX = 256   # batches up to this size run as one block


def _round_up(n, m):
    return ((n + m - 1) // m) * m


def _mlp_softmax_kernel(x_ref, w1_ref, b1_ref, w2_ref, b2_ref, w3_ref, b3_ref,
                        o_ref):
    # Matmuls in bf16 on the MXU with f32 accumulation; bias, ReLU and softmax
    # stay f32 on the VPU/EUP.
    x = x_ref[...].astype(jnp.bfloat16)

    # Layer 1: Linear + ReLU
    h = jnp.dot(x, w1_ref[...], preferred_element_type=jnp.float32)
    h = jnp.maximum(h + b1_ref[...], 0.0)

    # Layer 2: Linear + ReLU
    h = jnp.dot(h.astype(jnp.bfloat16), w2_ref[...],
                preferred_element_type=jnp.float32)
    h = jnp.maximum(h + b2_ref[...], 0.0)

    # Layer 3: Linear -> logits (true num_actions columns, no padding).
    logits = jnp.dot(h.astype(jnp.bfloat16), w3_ref[...],
                     preferred_element_type=jnp.float32)
    logits = logits + b3_ref[...]

    # Softmax over the action axis (dim=1 of the 2-D input).
    m = jnp.max(logits, axis=-1, keepdims=True)
    e = jnp.exp(logits - m)
    s = jnp.sum(e, axis=-1, keepdims=True)
    # Exact reciprocal keeps row sums == 1 to f32 precision.
    o_ref[...] = e * pl.reciprocal(s, approx=False)


def prepare_params(params, compute_dtype=jnp.bfloat16):
    """Casts / reshapes the MLP parameters ONCE (not per forward call).

    Weights are cast to `compute_dtype` (bf16 -> native MXU path, half the
    weight DMA); biases stay f32 and are reshaped to (1, out) for in-kernel
    broadcasting.  No shape padding is needed: whole-array BlockSpecs lift the
    (8,128) tiling requirement for these small weight matrices.
    """
    (w1, b1), (w2, b2), (w3, b3) = params
    return (
        w1.astype(compute_dtype), b1.astype(jnp.float32).reshape(1, -1),
        w2.astype(compute_dtype), b2.astype(jnp.float32).reshape(1, -1),
        w3.astype(compute_dtype), b3.astype(jnp.float32).reshape(1, -1),
    )


@jax.jit
def network_forward(x, prepared_params):
    """MLP + softmax forward using a single fused Pallas kernel."""
    w1, b1, w2, b2, w3, b3 = prepared_params
    B, S = x.shape
    A = w3.shape[1]

    x = x.astype(jnp.float32)

    if B <= _SINGLE_BLOCK_MAX:
        # One block == full batch (full-array dims lift the 8-row alignment).
        TB = B
    else:
        # At least two blocks so v7x's second TensorCore gets work; tiles are
        # multiples of 8 rows and capped at _MAX_BATCH_TILE (per-step VMEM at
        # TB=1024 is ~100 KiB including resident weights — trivially small).
        TB = min(_MAX_BATCH_TILE, _round_up(pl.cdiv(B, 2), 8))
    n_blocks = pl.cdiv(B, TB)   # ragged last block handled by Pallas; no host pad

    whole = lambda arr: pl.BlockSpec(arr.shape, lambda i: (0, 0))

    out = pl.pallas_call(
        _mlp_softmax_kernel,
        out_shape=jax.ShapeDtypeStruct((B, A), jnp.float32),
        grid=(n_blocks,),
        in_specs=[
            pl.BlockSpec((TB, S), lambda i: (i, 0)),   # x: blocked over batch
            whole(w1), whole(b1),                      # weights/biases resident
            whole(w2), whole(b2),
            whole(w3), whole(b3),
        ],
        # Output last dim == true num_actions (full-array dim): masked stores,
        # but ~32x less HBM write traffic than a 128-lane padded output and no
        # downstream slice.
        out_specs=pl.BlockSpec((TB, A), lambda i: (i, 0)),
        compiler_params=pltpu.CompilerParams(
            dimension_semantics=("parallel",),   # megacore-shard batch blocks
            vmem_limit_bytes=16 * 1024 * 1024,   # tiny kernel; don't reserve 32MiB
        ),
    )(x, w1, b1, w2, b2, w3, b3)
    return out


def init_linear_params(key, fan_in, fan_out):
    """Deterministic init mimicking torch.nn.Linear (uniform +/- 1/sqrt(fan_in))."""
    kw, kb = jax.random.split(key)
    bound = 1.0 / jnp.sqrt(float(fan_in))
    w = jax.random.uniform(kw, (fan_in, fan_out), jnp.float32, -bound, bound)
    b = jax.random.uniform(kb, (fan_out,), jnp.float32, -bound, bound)
    return w, b


def reference_forward_bf16(x, params):
    """Pure-JAX reference with the same bf16 matmul / f32 epilogue recipe."""
    (w1, b1), (w2, b2), (w3, b3) = params
    cd = jnp.bfloat16
    h = jnp.maximum(jnp.dot(x.astype(cd), w1.astype(cd),
                            preferred_element_type=jnp.float32) + b1, 0.0)
    h = jnp.maximum(jnp.dot(h.astype(cd), w2.astype(cd),
                            preferred_element_type=jnp.float32) + b2, 0.0)
    logits = jnp.dot(h.astype(cd), w3.astype(cd),
                     preferred_element_type=jnp.float32) + b3
    return jax.nn.softmax(logits, axis=1)


def reference_forward_f32(x, params):
    (w1, b1), (w2, b2), (w3, b3) = params
    h = jnp.maximum(x @ w1 + b1, 0.0)
    h = jnp.maximum(h @ w2 + b2, 0.0)
    return jax.nn.softmax(h @ w3 + b3, axis=1)


if __name__ == "__main__":
    # Small shapes consistent with the module: num_states=8, hidden=[64, 64],
    # num_actions=4, batch=2.
    num_states, num_actions = 8, 4
    hidden = [64, 64]
    batch = 2

    key = jax.random.PRNGKey(0)
    k_x, k1, k2, k3 = jax.random.split(key, 4)

    x = jax.random.normal(k_x, (batch, num_states), jnp.float32)

    dims = [num_states] + hidden + [num_actions]
    params = (
        init_linear_params(k1, dims[0], dims[1]),
        init_linear_params(k2, dims[1], dims[2]),
        init_linear_params(k3, dims[2], dims[3]),
    )

    # Cast / reshape parameters ONCE (hoisted out of the per-call path).
    prepared = jax.block_until_ready(prepare_params(params))

    # --- small-batch path (single block) ---
    out = jax.block_until_ready(network_forward(x, prepared))
    assert out.shape == (batch, num_actions)
    # Tight check against a reference that uses the same bf16-matmul recipe.
    ref_bf16 = reference_forward_bf16(x, params)
    assert jnp.allclose(out, ref_bf16, atol=1e-4, rtol=1e-4), (out, ref_bf16)
    # Loose check against the exact f32 reference (bf16 matmul rounding only).
    ref_f32 = reference_forward_f32(x, params)
    assert jnp.allclose(out, ref_f32, atol=5e-2, rtol=5e-2), (out, ref_f32)
    # Rows of a softmax must sum to 1.
    assert jnp.allclose(jnp.sum(out, axis=1), 1.0, atol=1e-5)

    # --- large-batch path (multi-block "parallel" grid, 1024-row tiles) ---
    xb = jax.random.normal(jax.random.PRNGKey(1), (2048, num_states), jnp.float32)
    outb = jax.block_until_ready(network_forward(xb, prepared))
    assert outb.shape == (2048, num_actions)
    assert jnp.allclose(outb, reference_forward_bf16(xb, params),
                        atol=1e-4, rtol=1e-4)
    assert jnp.allclose(jnp.sum(outb, axis=1), 1.0, atol=1e-5)

    print("KERNEL_OK")
</pallas_src>

<mosaic_0001>
module attributes {stable_mosaic.version = 11 : i64} {
  func.func @_mlp_softmax_kernel(%arg0: i32, %arg1: memref<2x8xf32, #tpu.memory_space<vmem>>, %arg2: memref<8x64xbf16, #tpu.memory_space<vmem>>, %arg3: memref<1x64xf32, #tpu.memory_space<vmem>>, %arg4: memref<64x64xbf16, #tpu.memory_space<vmem>>, %arg5: memref<1x64xf32, #tpu.memory_space<vmem>>, %arg6: memref<64x4xbf16, #tpu.memory_space<vmem>>, %arg7: memref<1x4xf32, #tpu.memory_space<vmem>>, %arg8: memref<2x4xf32, #tpu.memory_space<vmem>>) attributes {dimension_semantics = [#tpu.dimension_semantics<parallel>], iteration_bounds = array<i64: 1>, scalar_prefetch = 0 : i64, scratch_operands = 0 : i64, tpu.core_type = #tpu.core_type<tc>, window_params = [{transform_indices = @transform_0, window_bounds = array<i64: 2, 8>}, {pipeline_mode = #tpu.pipeline_mode<synchronous>, transform_indices = @transform_1, window_bounds = array<i64: 8, 64>}, {pipeline_mode = #tpu.pipeline_mode<synchronous>, transform_indices = @transform_2, window_bounds = array<i64: 1, 64>}, {pipeline_mode = #tpu.pipeline_mode<synchronous>, transform_indices = @transform_3, window_bounds = array<i64: 64, 64>}, {pipeline_mode = #tpu.pipeline_mode<synchronous>, transform_indices = @transform_4, window_bounds = array<i64: 1, 64>}, {pipeline_mode = #tpu.pipeline_mode<synchronous>, transform_indices = @transform_5, window_bounds = array<i64: 64, 4>}, {pipeline_mode = #tpu.pipeline_mode<synchronous>, transform_indices = @transform_6, window_bounds = array<i64: 1, 4>}, {transform_indices = @transform_7, window_bounds = array<i64: 2, 4>}]} {
    %c0 = arith.constant 0 : index
    %c0_0 = arith.constant 0 : index
    %0 = vector.load %arg1[%c0, %c0_0] : memref<2x8xf32, #tpu.memory_space<vmem>>, vector<2x8xf32>
    %1 = arith.truncf %0 : vector<2x8xf32> to vector<2x8xbf16>
    %c0_1 = arith.constant 0 : index
    %c0_2 = arith.constant 0 : index
    %2 = vector.load %arg2[%c0_1, %c0_2] : memref<8x64xbf16, #tpu.memory_space<vmem>>, vector<8x64xbf16>
    %cst = arith.constant dense<0.000000e+00> : vector<2x64xf32>
    %3 = tpu.matmul %1, %2, %cst {dimension_numbers = #tpu.dot_dimension_numbers<[1], [0], [0], [1], [0, 0, 1, 1], [], []>} : vector<2x8xbf16>, vector<8x64xbf16>, vector<2x64xf32> -> vector<2x64xf32>
    %c0_3 = arith.constant 0 : index
    %c0_4 = arith.constant 0 : index
    %4 = vector.load %arg3[%c0_3, %c0_4] : memref<1x64xf32, #tpu.memory_space<vmem>>, vector<1x64xf32>
    %5 = vector.broadcast %4 : vector<1x64xf32> to vector<2x64xf32>
    %6 = arith.addf %3, %5 : vector<2x64xf32>
    %cst_5 = arith.constant 0.000000e+00 : f32
    %7 = vector.broadcast %cst_5 : f32 to vector<2x64xf32>
    %8 = arith.maximumf %6, %7 : vector<2x64xf32>
    %9 = arith.truncf %8 : vector<2x64xf32> to vector<2x64xbf16>
    %c0_6 = arith.constant 0 : index
    %c0_7 = arith.constant 0 : index
    %10 = vector.load %arg4[%c0_6, %c0_7] : memref<64x64xbf16, #tpu.memory_space<vmem>>, vector<64x64xbf16>
    %cst_8 = arith.constant dense<0.000000e+00> : vector<2x64xf32>
    %11 = tpu.matmul %9, %10, %cst_8 {dimension_numbers = #tpu.dot_dimension_numbers<[1], [0], [0], [1], [0, 0, 1, 1], [], []>} : vector<2x64xbf16>, vector<64x64xbf16>, vector<2x64xf32> -> vector<2x64xf32>
    %c0_9 = arith.constant 0 : index
    %c0_10 = arith.constant 0 : index
    %12 = vector.load %arg5[%c0_9, %c0_10] : memref<1x64xf32, #tpu.memory_space<vmem>>, vector<1x64xf32>
    %13 = vector.broadcast %12 : vector<1x64xf32> to vector<2x64xf32>
    %14 = arith.addf %11, %13 : vector<2x64xf32>
    %cst_11 = arith.constant 0.000000e+00 : f32
    %15 = vector.broadcast %cst_11 : f32 to vector<2x64xf32>
    %16 = arith.maximumf %14, %15 : vector<2x64xf32>
    %17 = arith.truncf %16 : vector<2x64xf32> to vector<2x64xbf16>
    %c0_12 = arith.constant 0 : index
    %c0_13 = arith.constant 0 : index
    %18 = vector.load %arg6[%c0_12, %c0_13] : memref<64x4xbf16, #tpu.memory_space<vmem>>, vector<64x4xbf16>
    %cst_14 = arith.constant dense<0.000000e+00> : vector<2x4xf32>
    %19 = tpu.matmul %17, %18, %cst_14 {dimension_numbers = #tpu.dot_dimension_numbers<[1], [0], [0], [1], [0, 0, 1, 1], [], []>} : vector<2x64xbf16>, vector<64x4xbf16>, vector<2x4xf32> -> vector<2x4xf32>
    %c0_15 = arith.constant 0 : index
    %c0_16 = arith.constant 0 : index
    %20 = vector.load %arg7[%c0_15, %c0_16] : memref<1x4xf32, #tpu.memory_space<vmem>>, vector<1x4xf32>
    %21 = vector.broadcast %20 : vector<1x4xf32> to vector<2x4xf32>
    %22 = arith.addf %19, %21 : vector<2x4xf32>
    %cst_17 = arith.constant dense<0xFF800000> : vector<2xf32>
    %23 = vector.multi_reduction <maximumf>, %22, %cst_17 [1] : vector<2x4xf32> to vector<2xf32>
    %24 = vector.shape_cast %23 : vector<2xf32> to vector<2x1xf32>
    %25 = vector.broadcast %24 : vector<2x1xf32> to vector<2x4xf32>
    %26 = arith.subf %22, %25 : vector<2x4xf32>
    %27 = math.exp %26 : vector<2x4xf32>
    %cst_18 = arith.constant dense<0.000000e+00> : vector<2xf32>
    %28 = vector.multi_reduction <add>, %27, %cst_18 [1] : vector<2x4xf32> to vector<2xf32>
    %29 = vector.shape_cast %28 : vector<2xf32> to vector<2x1xf32>
    %30 = tpu.reciprocal %29 : vector<2x1xf32> -> vector<2x1xf32>
    %31 = vector.broadcast %30 : vector<2x1xf32> to vector<2x4xf32>
    %32 = arith.mulf %27, %31 : vector<2x4xf32>
    %c0_19 = arith.constant 0 : index
    %c0_20 = arith.constant 0 : index
    %33 = vector.load %arg8[%c0_19, %c0_20] : memref<2x4xf32, #tpu.memory_space<vmem>>, vector<2x4xf32>
    tpu.vector_store %arg8[%c0_19, %c0_20], %32 {strides = array<i32>} : memref<2x4xf32, #tpu.memory_space<vmem>>, vector<2x4xf32>,
    return
  }
  func.func @transform_0(%arg0: i32) -> (i32, i32) {
    %c0_i32 = arith.constant 0 : i32
    %c0_i32_0 = arith.constant 0 : i32
    return %arg0, %c0_i32 : i32, i32
  }
  func.func @transform_1(%arg0: i32) -> (i32, i32) {
    %c0_i32 = arith.constant 0 : i32
    %c0_i32_0 = arith.constant 0 : i32
    %c0_i32_1 = arith.constant 0 : i32
    return %c0_i32, %c0_i32_0 : i32, i32
  }
  func.func @transform_2(%arg0: i32) -> (i32, i32) {
    %c0_i32 = arith.constant 0 : i32
    %c0_i32_0 = arith.constant 0 : i32
    %c0_i32_1 = arith.constant 0 : i32
    return %c0_i32, %c0_i32_0 : i32, i32
  }
  func.func @transform_3(%arg0: i32) -> (i32, i32) {
    %c0_i32 = arith.constant 0 : i32
    %c0_i32_0 = arith.constant 0 : i32
    %c0_i32_1 = arith.constant 0 : i32
    return %c0_i32, %c0_i32_0 : i32, i32
  }
  func.func @transform_4(%arg0: i32) -> (i32, i32) {
    %c0_i32 = arith.constant 0 : i32
    %c0_i32_0 = arith.constant 0 : i32
    %c0_i32_1 = arith.constant 0 : i32
    return %c0_i32, %c0_i32_0 : i32, i32
  }
  func.func @transform_5(%arg0: i32) -> (i32, i32) {
    %c0_i32 = arith.constant 0 : i32
    %c0_i32_0 = arith.constant 0 : i32
    %c0_i32_1 = arith.constant 0 : i32
    return %c0_i32, %c0_i32_0 : i32, i32
  }
  func.func @transform_6(%arg0: i32) -> (i32, i32) {
    %c0_i32 = arith.constant 0 : i32
    %c0_i32_0 = arith.constant 0 : i32
    %c0_i32_1 = arith.constant 0 : i32
    return %c0_i32, %c0_i32_0 : i32, i32
  }
  func.func @transform_7(%arg0: i32) -> (i32, i32) {
    %c0_i32 = arith.constant 0 : i32
    %c0_i32_0 = arith.constant 0 : i32
    return %arg0, %c0_i32 : i32, i32
  }
}

</mosaic_0001>

<llo_original>
// kernel: network_forward.1
$region0: #{network_forward.1}
  #allocation0 [shape = 'u32[]', space=smem, size = 0x4, offset = 0x4, fixed_abs, tag = 'smem constant byte address 0x4 - core index']
  #allocation1 [shape = 'u32[144,128]{1,0:T(1,128)}', space=vmem, size = 0x12000, scoped, tag = 'internal scratch']
  %s0 = inlined_call_operand.vmem [shape: f32[2,8], index: 0, kind: input, shape index: {}]
  %s1 = inlined_call_operand.vmem [shape: bf16[8,64], index: 1, kind: input, shape index: {}]
  %s2 = inlined_call_operand.vmem [shape: f32[1,64], index: 2, kind: input, shape index: {}]
  %s3 = inlined_call_operand.vmem [shape: bf16[64,64], index: 3, kind: input, shape index: {}]
  %s4 = inlined_call_operand.vmem [shape: f32[1,64], index: 4, kind: input, shape index: {}]
  %s5 = inlined_call_operand.vmem [shape: bf16[64,4], index: 5, kind: input, shape index: {}]
  %s6 = inlined_call_operand.vmem [shape: f32[1,4], index: 6, kind: input, shape index: {}]
  %s7 = inlined_call_operand.hbm [shape: f32[2,4], index: 7, kind: output, shape index: {}]
  %s8 = sld [smem:[#allocation0]]
  $region38: #{network_forward.1} parent=0
    _
  %s10 = ssub.s32 1, %s8
  %s11 = scalar_select 0, %s10, %s8
  $region1: #{network_forward.1} parent=0
    #allocation2 [shape = 'u8[1024]{0}', space=vmem, size = 0x400, scoped, tag = 'output window, operand 0, single buffered']
    #allocation3 [shape = 's32[1]{0}', space=sflag, size = 0x4, scoped, tag = 'scoped memory for network_forward.1']
    %12 = vsyncpa [#allocation3], 0
    // Predicated region
    $region2: #{network_forward.1} parent=1 // pred_check
      _
    $region3: #{network_forward.1} parent=1 // pred_check_branch
      %14 = sbr.rel (0) target = $region5
    $region4: #{network_forward.1} parent=1 // pred_region
      _
    $region5: #{network_forward.1} parent=1 // pred_fallthru
      _
    // Predicated region
    $region6: #{network_forward.1} parent=1 // pred_check
      _
    $region7: #{network_forward.1} parent=1 // pred_check_branch
      %16 = sbr.rel (0) target = $region9
    $region8: #{network_forward.1} parent=1 // pred_region
      _
    $region9: #{network_forward.1} parent=1 // pred_fallthru
      _
    // Predicated region
    $region10: #{network_forward.1} parent=1 // pred_check
      _
    $region11: #{network_forward.1} parent=1 // pred_check_branch
      %18 = sbr.rel (0) target = $region13
    $region12: #{network_forward.1} parent=1 // pred_region
      _
    $region13: #{network_forward.1} parent=1 // pred_fallthru
      _
    // Predicated region
    $region14: #{network_forward.1} parent=1 // pred_check
      _
    $region15: #{network_forward.1} parent=1 // pred_check_branch
      %20 = sbr.rel (0) target = $region17
    $region16: #{network_forward.1} parent=1 // pred_region
      _
    $region17: #{network_forward.1} parent=1 // pred_fallthru
      _
    // Predicated region
    $region18: #{network_forward.1} parent=1 // pred_check
      _
    $region19: #{network_forward.1} parent=1 // pred_check_branch
      %22 = sbr.rel (0) target = $region21
    $region20: #{network_forward.1} parent=1 // pred_region
      _
    $region21: #{network_forward.1} parent=1 // pred_fallthru
      _
    // Predicated region
    $region22: #{network_forward.1} parent=1 // pred_check
      _
    $region23: #{network_forward.1} parent=1 // pred_check_branch
      %24 = sbr.rel (0) target = $region25
    $region24: #{network_forward.1} parent=1 // pred_region
      _
    $region25: #{network_forward.1} parent=1 // pred_fallthru
      _
    // Predicated region
    $region26: #{network_forward.1} parent=1 // pred_check
      _
    $region27: #{network_forward.1} parent=1 // pred_check_branch
      %26 = sbr.rel (0) target = $region29
    $region28: #{network_forward.1} parent=1 // pred_region
      _
    $region29: #{network_forward.1} parent=1 // pred_fallthru
      _
    %v28 = vld [vmem:[%s0] sm:$0x3]
    %v29 = vpack.c.bf16 %v28, %v28
    %v30 = vld [vmem:[%s1] sm:$0xf]
    %v31 = vld [vmem:[%s2] sm:$0x1]
    %v33 = vlaneseq
    %v34 = vshrl.u32 %v33, 7
    %v35 = vsub.s32 0, %v34
    %v36 = vrot.slane %v31, %v35
    %vm38 = vcmask 64512
    %v40 = vsel %vm38, %v29, 0
    %vm42 = vcmask 1043456
    %v44 = vsel %vm42, %v30, 0
    %46 = vmatprep.subr.bf16.mxu0 0
    %47 = vmatpush1.bf16.msra.mxu0 %v44
    %48 = vmatprep.subr.bf16.mxu0 0
    %49 = vmatpush1.bf16.msra.mxu0 0
    %50 = vmatprep.subr.bf16.mxu0 0
    %51 = vmatpush1.bf16.msra.mxu0 0
    %52 = vmatprep.subr.bf16.mxu0 0
    %53 = vmatpush1.bf16.msra.mxu0 0
    %54 = vmatprep.subr.bf16.mxu0 0
    %55 = vmatpush1.bf16.msra.mxu0 0
    %56 = vmatprep.subr.bf16.mxu0 0
    %57 = vmatpush1.bf16.msra.mxu0 0
    %58 = vmatprep.subr.bf16.mxu0 0
    %59 = vmatpush1.bf16.msra.mxu0 0
    %60 = vmatprep.subr.bf16.mxu0 0
    %61 = vmatpush1.bf16.msra.mxu0 0
    %62 = vmatprep.subr.bf16.mxu0 0
    %63 = vmatpush1.bf16.msra.mxu0 0
    %64 = vmatprep.subr.bf16.mxu0 0
    %65 = vmatpush1.bf16.msra.mxu0 0
    %66 = vmatprep.subr.bf16.mxu0 0
    %67 = vmatpush1.bf16.msra.mxu0 0
    %68 = vmatprep.subr.bf16.mxu0 0
    %69 = vmatpush1.bf16.msra.mxu0 0
    %70 = vmatprep.subr.bf16.mxu0 0
    %71 = vmatpush1.bf16.msra.mxu0 0
    %72 = vmatprep.subr.bf16.mxu0 0
    %73 = vmatpush1.bf16.msra.mxu0 0
    %74 = vmatprep.subr.bf16.mxu0 0
    %75 = vmatpush1.bf16.msra.mxu0 0
    %76 = vmatprep.subr.bf16.mxu0 0
    %77 = vmatpush1.bf16.msra.mxu0 0
    %78 = vmatprep.mubr.bf16.mxu0 0
    %79 = vmatmul.mubr.bf16.gmra.mrb[0].mxu0 %v40
    %v80 = vpop.f32.mrb[0].mxu0
    %v81 = vadd.f32 %v36, %v80
    %v82 = vpop.f32.mrb[0].mxu0
    %v83 = vpop.f32.mrb[0].mxu0
    %v84 = vpop.f32.mrb[0].mxu0
    %85 = vdwg.mxu0
    %v86 = vmax.f32 %v81, 0.0
    %v87 = vpack.c.bf16 %v86, %v86
    %v88 = vld [vmem:[%s3] sm:$0xf]
    %v89 = vld [vmem:[%s3 + $0x4] sm:$0xf]
    %v90 = vld [vmem:[%s3 + $0x8] sm:$0xf]
    %v91 = vld [vmem:[%s3 + $0xc] sm:$0xf]
    %v92 = vld [vmem:[%s3 + $0x10] sm:$0xf]
    %v93 = vld [vmem:[%s3 + $0x14] sm:$0xf]
    %v94 = vld [vmem:[%s3 + $0x18] sm:$0xf]
    %v95 = vld [vmem:[%s3 + $0x1c] sm:$0xf]
    %v96 = vld [vmem:[%s4] sm:$0x1]
    %v98 = vlaneseq
    %v99 = vshrl.u32 %v98, 7
    %v100 = vsub.s32 0, %v99
    %v101 = vrot.slane %v96, %v100
    %v111 = vunpack.c.l.b16 %v88
    %v112 = vunpack.c.l.b16 %v89
    %v113 = vunpack.c.l.b16 %v90
    %v114 = vunpack.c.l.b16 %v91
    %v115 = vunpack.c.l.b16 %v92
    %v116 = vunpack.c.l.b16 %v93
    %v117 = vunpack.c.l.b16 %v94
    %v118 = vunpack.c.l.b16 %v95
    %v119 = vpack.c.b16 %v112, %v111
    %v120 = vpack.c.b16 %v114, %v113
    %v121 = vpack.c.b16 %v116, %v115
    %v122 = vpack.c.b16 %v118, %v117
    %vm127 = vcmask 523264
    %v129 = vsel %vm127, %v87, 0
    %131 = vmatprep.subr.bf16.mxu0 0
    %132 = vmatpush1.bf16.msra.mxu0 %v119
    %133 = vmatprep.subr.bf16.mxu0 0
    %134 = vmatpush1.bf16.msra.mxu0 %v120
    %135 = vmatprep.subr.bf16.mxu0 0
    %136 = vmatpush1.bf16.msra.mxu0 %v121
    %137 = vmatprep.subr.bf16.mxu0 0
    %138 = vmatpush1.bf16.msra.mxu0 %v122
    %139 = vmatprep.subr.bf16.mxu0 0
    %140 = vmatpush1.bf16.msra.mxu0 0
    %141 = vmatprep.subr.bf16.mxu0 0
    %142 = vmatpush1.bf16.msra.mxu0 0
    %143 = vmatprep.subr.bf16.mxu0 0
    %144 = vmatpush1.bf16.msra.mxu0 0
    %145 = vmatprep.subr.bf16.mxu0 0
    %146 = vmatpush1.bf16.msra.mxu0 0
    %147 = vmatprep.subr.bf16.mxu0 0
    %148 = vmatpush1.bf16.msra.mxu0 0
    %149 = vmatprep.subr.bf16.mxu0 0
    %150 = vmatpush1.bf16.msra.mxu0 0
    %151 = vmatprep.subr.bf16.mxu0 0
    %152 = vmatpush1.bf16.msra.mxu0 0
    %153 = vmatprep.subr.bf16.mxu0 0
    %154 = vmatpush1.bf16.msra.mxu0 0
    %155 = vmatprep.subr.bf16.mxu0 0
    %156 = vmatpush1.bf16.msra.mxu0 0
    %157 = vmatprep.subr.bf16.mxu0 0
    %158 = vmatpush1.bf16.msra.mxu0 0
    %159 = vmatprep.subr.bf16.mxu0 0
    %160 = vmatpush1.bf16.msra.mxu0 0
    %161 = vmatprep.subr.bf16.mxu0 0
    %162 = vmatpush1.bf16.msra.mxu0 0
    %163 = vmatprep.mubr.bf16.mxu0 0
    %164 = vmatmul.mubr.bf16.gmra.mrb[0].mxu0 %v129
    %v165 = vpop.f32.mrb[0].mxu0
    %v166 = vadd.f32 %v101, %v165
    %v167 = vpop.f32.mrb[0].mxu0
    %v168 = vpop.f32.mrb[0].mxu0
    %v169 = vpop.f32.mrb[0].mxu0
    %170 = vdwg.mxu0
    %v171 = vmax.f32 %v166, 0.0
    %v172 = vpack.c.bf16 %v171, %v171
    %v173 = vld [vmem:[%s5] sm:$0xf]
    %v174 = vld [vmem:[%s5 + $0x4] sm:$0xf]
    %v175 = vld [vmem:[%s5 + $0x8] sm:$0xf]
    %v176 = vld [vmem:[%s5 + $0xc] sm:$0xf]
    %v177 = vld [vmem:[%s5 + $0x10] sm:$0xf]
    %v178 = vld [vmem:[%s5 + $0x14] sm:$0xf]
    %v179 = vld [vmem:[%s5 + $0x18] sm:$0xf]
    %v180 = vld [vmem:[%s5 + $0x1c] sm:$0xf]
    %v181 = vld [vmem:[%s6] sm:$0x1]
    %v183 = vlaneseq
    %v184 = vshrl.u32 %v183, 7
    %v185 = vsub.s32 0, %v184
    %v186 = vrot.slane %v181, %v185
    %v196 = vunpack.c.l.b16 %v173
    %v197 = vunpack.c.l.b16 %v174
    %v198 = vunpack.c.l.b16 %v175
    %v199 = vunpack.c.l.b16 %v176
    %v200 = vunpack.c.l.b16 %v177
    %v201 = vunpack.c.l.b16 %v178
    %v202 = vunpack.c.l.b16 %v179
    %v203 = vunpack.c.l.b16 %v180
    %v204 = vpack.c.b16 %v197, %v196
    %v205 = vpack.c.b16 %v199, %v198
    %v206 = vpack.c.b16 %v201, %v200
    %v207 = vpack.c.b16 %v203, %v202
    %v213 = vsel %vm127, %v172, 0
    %215 = vmatprep.subr.bf16.mxu0 0
    %216 = vmatpush1.bf16.msra.mxu0 %v204
    %217 = vmatprep.subr.bf16.mxu0 0
    %218 = vmatpush1.bf16.msra.mxu0 %v205
    %219 = vmatprep.subr.bf16.mxu0 0
    %220 = vmatpush1.bf16.msra.mxu0 %v206
    %221 = vmatprep.subr.bf16.mxu0 0
    %222 = vmatpush1.bf16.msra.mxu0 %v207
    %223 = vmatprep.subr.bf16.mxu0 0
    %224 = vmatpush1.bf16.msra.mxu0 0
    %225 = vmatprep.subr.bf16.mxu0 0
    %226 = vmatpush1.bf16.msra.mxu0 0
    %227 = vmatprep.subr.bf16.mxu0 0
    %228 = vmatpush1.bf16.msra.mxu0 0
    %229 = vmatprep.subr.bf16.mxu0 0
    %230 = vmatpush1.bf16.msra.mxu0 0
    %231 = vmatprep.subr.bf16.mxu0 0
    %232 = vmatpush1.bf16.msra.mxu0 0
    %233 = vmatprep.subr.bf16.mxu0 0
    %234 = vmatpush1.bf16.msra.mxu0 0
    %235 = vmatprep.subr.bf16.mxu0 0
    %236 = vmatpush1.bf16.msra.mxu0 0
    %237 = vmatprep.subr.bf16.mxu0 0
    %238 = vmatpush1.bf16.msra.mxu0 0
    %239 = vmatprep.subr.bf16.mxu0 0
    %240 = vmatpush1.bf16.msra.mxu0 0
    %241 = vmatprep.subr.bf16.mxu0 0
    %242 = vmatpush1.bf16.msra.mxu0 0
    %243 = vmatprep.subr.bf16.mxu0 0
    %244 = vmatpush1.bf16.msra.mxu0 0
    %245 = vmatprep.subr.bf16.mxu0 0
    %246 = vmatpush1.bf16.msra.mxu0 0
    %247 = vmatprep.mubr.bf16.mxu0 0
    %248 = vmatmul.mubr.bf16.gmra.mrb[0].mxu0 %v213
    %v249 = vpop.f32.mrb[0].mxu0
    %v250 = vadd.f32 %v186, %v249
    %v251 = vpop.f32.mrb[0].mxu0
    %v252 = vpop.f32.mrb[0].mxu0
    %v253 = vpop.f32.mrb[0].mxu0
    %254 = vdwg.mxu0
    %vm255 = vcmask 25600
    %v256 = vsel %vm255, %v250, -inf
    %257 = vmax.xlane.f32.xlu0 %v256
    %v258 = vpop.xlane.xlu0 %257
    %v259 = vsub.f32 %v250, %v258
    %v260 = vmul.f32 %v259, 1.442695
    %v261 = vpow.pop %v260
    %v262 = vsel %vm255, %v261, 0.0
    %263 = vadd.xlane.f32.xlu0 %v262
    %v264 = vpop.xlane.xlu0 %263
    %v265 = vrcp.pop %v264
    %v266 = vmul.f32 %v261, %v265
    %267 = vst.msk [vmem:[#allocation2] sm:$0x3] %vm255, %v266
    // Predicated region
    $region30: #{network_forward.1} parent=1 // pred_check
      _
    $region31: #{network_forward.1} parent=1 // pred_check_branch
      %269 = sbr.rel (0) target = $region33
    $region32: #{network_forward.1} parent=1 // pred_region
      %s271 = ssub.s32 32, 32
      %272 = vsyncadd [#allocation3], %s271
      %s274 = sshll.u32 [#allocation2], 4
      %s275 = int_to_ptr.vmem [resolvable:$true] %s274
      %277 = dma.vmem_to_hbm [thread:$0]  %s275, 32, %s7, [#allocation3]
    $region33: #{network_forward.1} parent=1 // pred_fallthru
      _
    // Predicated region
    $region34: #{network_forward.1} parent=1 // pred_check
      _
    $region35: #{network_forward.1} parent=1 // pred_check_branch
      %279 = sbr.rel (0) target = $region37
    $region36: #{network_forward.1} parent=1 // pred_region
      %280 = dma.done [#allocation3], 32
    $region37: #{network_forward.1} parent=1 // pred_fallthru
      _
    %281 = vsyncpa [#allocation3], 1

</llo_original>
